<compile_context>
chip_gen: v7x
topology: tpu7x:2x2x1
jax: 0.10.0
libtpu: 0.0.40
codegen_flags: <defaults>
</compile_context>

<pallas_src>
import jax
import jax.numpy as jnp
from jax.experimental import pallas as pl
from jax.experimental.pallas import tpu as pltpu

P = 32        # BatchNorm1d num_features == points per voxel
F_IN = 10     # Linear in_features
F_OUT = 64    # Linear out_features
EPS = 1e-3    # BatchNorm eps


def _pfn_kernel(x_ref, w_ref, scale_ref, shift_ref, o_ref):
    # x_ref:     (tn, 16, 20)   tile of voxels, point-pairs packed along lanes
    # w_ref:     (20, 128)      block-diag(W^T, W^T)
    # scale_ref: (16, 128)      folded BN scale, lanes 0:64 -> point 2p, 64:128 -> 2p+1
    # shift_ref: (16, 128)      folded BN shift, same layout
    # o_ref:     (tn, 16, 128)  lane-dense output tile
    tn, pp, kk = x_ref.shape
    y = jnp.dot(x_ref[...].reshape(tn * pp, kk), w_ref[...],
                preferred_element_type=jnp.float32)            # (tn*16, 128)
    y = y.reshape(tn, pp, w_ref.shape[1])                       # (tn, 16, 128)
    o_ref[...] = (y * scale_ref[...][None] + shift_ref[...][None]).astype(o_ref.dtype)


def pfn_layer0(x, w_t, bn_scale, bn_shift, *, tn=512, out_dtype=jnp.float32):
    """Linear(10->64, no bias) + eval-mode BatchNorm1d(32).

    x: (N, 32, 10) float32 -> returns (N, 32, 64) in out_dtype.
    # TODO(synk): out_dtype=jnp.bfloat16 would halve the dominant store traffic,
    # but changes the data-dependent ScatterMax stub shape, so default stays f32.
    """
    n = x.shape[0]
    half_p = P // 2           # 16 packed rows per voxel
    k2 = 2 * F_IN             # 20
    c2 = 2 * F_OUT            # 128 output lanes -> unmasked, lane-dense stores

    # (N, 32, 10) -> (N, 16, 20): packed row p holds points 2p and 2p+1.
    x2 = x.reshape(n, half_p, k2)

    # Block-diagonal weight so one 128-wide matmul yields both points' outputs.
    zeros = jnp.zeros((F_IN, F_OUT), w_t.dtype)
    w2 = jnp.concatenate(
        [jnp.concatenate([w_t, zeros], axis=1),
         jnp.concatenate([zeros, w_t], axis=1)], axis=0)        # (20, 128)

    # BN scale/shift as tiny (16, 128) maps (broadcast in-kernel, not tiled).
    scale2d = jnp.repeat(bn_scale.astype(jnp.float32).reshape(half_p, 2),
                         F_OUT, axis=1)                         # (16, 128)
    shift2d = jnp.repeat(bn_shift.astype(jnp.float32).reshape(half_p, 2),
                         F_OUT, axis=1)                         # (16, 128)

    # Large voxel tile, but keep grid >= 2 (v7x megacore) and pad N to a multiple.
    tn = max(1, min(tn, pl.cdiv(n, 2)))
    n_pad = pl.cdiv(n, tn) * tn
    if n_pad != n:
        x2 = jnp.pad(x2, ((0, n_pad - n), (0, 0), (0, 0)))

    out = pl.pallas_call(
        _pfn_kernel,
        out_shape=jax.ShapeDtypeStruct((n_pad, half_p, c2), out_dtype),
        grid_spec=pltpu.PrefetchScalarGridSpec(
            num_scalar_prefetch=0,
            grid=(n_pad // tn,),
            in_specs=[
                pl.BlockSpec((tn, half_p, k2), lambda i: (i, 0, 0)),
                pl.BlockSpec((k2, c2), lambda i: (0, 0)),
                pl.BlockSpec((half_p, c2), lambda i: (0, 0)),
                pl.BlockSpec((half_p, c2), lambda i: (0, 0)),
            ],
            out_specs=pl.BlockSpec((tn, half_p, c2), lambda i: (i, 0, 0)),
        ),
        # tn=512 -> ~9.5 MB double-buffered: safely inside v7x's 32 MiB default
        # scoped VMEM (64 MiB physical) and trivially inside v5e/v6e.
        compiler_params=pltpu.CompilerParams(
            dimension_semantics=("parallel",)),
    )(x2, w2, scale2d, shift2d)

    # (n, 16, 128) row-major is bit-identical to (n, 32, 64): reshape is free.
    return out[:n].reshape(n, P, F_OUT)


def _scatter_max_stub(y):
    # TODO(synk): ScatterMaxPlugin is an ONNX plugin stub in the reference; its
    # forward returns zeros with a data-dependent shape (unique-count of y), so
    # it is eager host-side glue and deliberately kept OFF the Pallas/jit hot path.
    n_unique = int(jnp.unique(y).shape[0])
    return jnp.zeros((n_unique, y.shape[1]), dtype=jnp.float32)


def vfe_forward(x, params, *, tn=512):
    w_t, gamma, beta, run_mean, run_var = params
    scale = gamma * jax.lax.rsqrt(run_var + EPS)   # (32,)
    shift = beta - run_mean * scale                # (32,)
    y = pfn_layer0(x, w_t, scale, shift, tn=tn)    # (N, 32, 64)  -- Pallas hot path
    out = _scatter_max_stub(y)                     # eager, data-dependent shape
    return out, y


def _init_params(key):
    k_w, k_g, k_b, k_m, k_v = jax.random.split(key, 5)
    # torch Linear(10, 64, bias=False): weight (64, 10); we store its transpose.
    bound = 1.0 / jnp.sqrt(jnp.float32(F_IN))
    w = jax.random.uniform(k_w, (F_OUT, F_IN), jnp.float32, -bound, bound)
    w_t = w.T                                             # (10, 64)
    gamma = 1.0 + 0.1 * jax.random.normal(k_g, (P,), jnp.float32)
    beta = 0.1 * jax.random.normal(k_b, (P,), jnp.float32)
    run_mean = 0.1 * jax.random.normal(k_m, (P,), jnp.float32)
    run_var = jax.random.uniform(k_v, (P,), jnp.float32, 0.5, 1.5)
    return w_t, gamma, beta, run_mean, run_var


if __name__ == "__main__":
    key = jax.random.PRNGKey(0)
    k_params, k_x = jax.random.split(key)
    params = _init_params(k_params)

    N = 8                                                  # voxels (small test)
    x = jax.random.normal(k_x, (N, P, F_IN), jnp.float32)  # (8, 32, 10)

    out, y = vfe_forward(x, params)
    out = jax.block_until_ready(out)
    y = jax.block_until_ready(y)

    # Check the Pallas hot path (Linear + BN) against a pure-JAX reference.
    w_t, gamma, beta, run_mean, run_var = params
    y_ref = jnp.einsum("npf,fo->npo", x, w_t)
    y_ref = (y_ref - run_mean[None, :, None]) * jax.lax.rsqrt(
        run_var[None, :, None] + EPS) * gamma[None, :, None] + beta[None, :, None]
    assert y.shape == (N, P, F_OUT)
    assert out.shape[1] == P and out.dtype == jnp.float32
    assert bool(jnp.all(out == 0.0))
    assert jnp.allclose(y, y_ref, atol=1e-4, rtol=1e-4)

    # Also exercise a tail-padded / multi-step grid configuration.
    N2 = 13
    x2 = jax.random.normal(jax.random.PRNGKey(1), (N2, P, F_IN), jnp.float32)
    scale = gamma * jax.lax.rsqrt(run_var + EPS)
    shift = beta - run_mean * scale
    y2 = jax.block_until_ready(pfn_layer0(x2, w_t, scale, shift, tn=4))
    y2_ref = jnp.einsum("npf,fo->npo", x2, w_t) * scale[None, :, None] + shift[None, :, None]
    assert jnp.allclose(y2, y2_ref, atol=1e-4, rtol=1e-4)

    print("KERNEL_OK")
</pallas_src>

<mosaic_0001>
module attributes {stable_mosaic.version = 11 : i64} {
  func.func @_pfn_kernel(%arg0: i32, %arg1: memref<4x16x20xf32, #tpu.memory_space<vmem>>, %arg2: memref<20x128xf32, #tpu.memory_space<vmem>>, %arg3: memref<16x128xf32, #tpu.memory_space<vmem>>, %arg4: memref<16x128xf32, #tpu.memory_space<vmem>>, %arg5: memref<4x16x128xf32, #tpu.memory_space<vmem>>) attributes {dimension_semantics = [#tpu.dimension_semantics<parallel>], iteration_bounds = array<i64: 2>, scalar_prefetch = 0 : i64, scratch_operands = 0 : i64, tpu.core_type = #tpu.core_type<tc>, window_params = [{transform_indices = @transform_0, window_bounds = array<i64: 4, 16, 20>}, {pipeline_mode = #tpu.pipeline_mode<synchronous>, transform_indices = @transform_1, window_bounds = array<i64: 20, 128>}, {pipeline_mode = #tpu.pipeline_mode<synchronous>, transform_indices = @transform_2, window_bounds = array<i64: 16, 128>}, {pipeline_mode = #tpu.pipeline_mode<synchronous>, transform_indices = @transform_3, window_bounds = array<i64: 16, 128>}, {transform_indices = @transform_4, window_bounds = array<i64: 4, 16, 128>}]} {
    %c0 = arith.constant 0 : index
    %c0_0 = arith.constant 0 : index
    %c0_1 = arith.constant 0 : index
    %0 = vector.load %arg1[%c0, %c0_0, %c0_1] : memref<4x16x20xf32, #tpu.memory_space<vmem>>, vector<4x16x20xf32>
    %1 = vector.shape_cast %0 : vector<4x16x20xf32> to vector<64x20xf32>
    %c0_2 = arith.constant 0 : index
    %c0_3 = arith.constant 0 : index
    %2 = vector.load %arg2[%c0_2, %c0_3] : memref<20x128xf32, #tpu.memory_space<vmem>>, vector<20x128xf32>
    %cst = arith.constant dense<0.000000e+00> : vector<64x128xf32>
    %3 = tpu.matmul %1, %2, %cst {dimension_numbers = #tpu.dot_dimension_numbers<[1], [0], [0], [1], [0, 0, 1, 1], [], []>} : vector<64x20xf32>, vector<20x128xf32>, vector<64x128xf32> -> vector<64x128xf32>
    %4 = vector.shape_cast %3 : vector<64x128xf32> to vector<4x16x128xf32>
    %c0_4 = arith.constant 0 : index
    %c0_5 = arith.constant 0 : index
    %5 = vector.load %arg3[%c0_4, %c0_5] : memref<16x128xf32, #tpu.memory_space<vmem>>, vector<16x128xf32>
    %6 = vector.shape_cast %5 : vector<16x128xf32> to vector<1x16x128xf32>
    %7 = vector.broadcast %6 : vector<1x16x128xf32> to vector<4x16x128xf32>
    %8 = arith.mulf %4, %7 : vector<4x16x128xf32>
    %c0_6 = arith.constant 0 : index
    %c0_7 = arith.constant 0 : index
    %9 = vector.load %arg4[%c0_6, %c0_7] : memref<16x128xf32, #tpu.memory_space<vmem>>, vector<16x128xf32>
    %10 = vector.shape_cast %9 : vector<16x128xf32> to vector<1x16x128xf32>
    %11 = vector.broadcast %10 : vector<1x16x128xf32> to vector<4x16x128xf32>
    %12 = arith.addf %8, %11 : vector<4x16x128xf32>
    %c0_8 = arith.constant 0 : index
    %c0_9 = arith.constant 0 : index
    %c0_10 = arith.constant 0 : index
    %13 = vector.load %arg5[%c0_8, %c0_9, %c0_10] : memref<4x16x128xf32, #tpu.memory_space<vmem>>, vector<4x16x128xf32>
    tpu.vector_store %arg5[%c0_8, %c0_9, %c0_10], %12 {strides = array<i32>} : memref<4x16x128xf32, #tpu.memory_space<vmem>>, vector<4x16x128xf32>,
    return
  }
  func.func @transform_0(%arg0: i32) -> (i32, i32, i32) {
    %c0_i32 = arith.constant 0 : i32
    %c0_i32_0 = arith.constant 0 : i32
    %c0_i32_1 = arith.constant 0 : i32
    return %arg0, %c0_i32, %c0_i32_0 : i32, i32, i32
  }
  func.func @transform_1(%arg0: i32) -> (i32, i32) {
    %c0_i32 = arith.constant 0 : i32
    %c0_i32_0 = arith.constant 0 : i32
    %c0_i32_1 = arith.constant 0 : i32
    return %c0_i32, %c0_i32_0 : i32, i32
  }
  func.func @transform_2(%arg0: i32) -> (i32, i32) {
    %c0_i32 = arith.constant 0 : i32
    %c0_i32_0 = arith.constant 0 : i32
    %c0_i32_1 = arith.constant 0 : i32
    return %c0_i32, %c0_i32_0 : i32, i32
  }
  func.func @transform_3(%arg0: i32) -> (i32, i32) {
    %c0_i32 = arith.constant 0 : i32
    %c0_i32_0 = arith.constant 0 : i32
    %c0_i32_1 = arith.constant 0 : i32
    return %c0_i32, %c0_i32_0 : i32, i32
  }
  func.func @transform_4(%arg0: i32) -> (i32, i32, i32) {
    %c0_i32 = arith.constant 0 : i32
    %c0_i32_0 = arith.constant 0 : i32
    %c0_i32_1 = arith.constant 0 : i32
    return %arg0, %c0_i32, %c0_i32_0 : i32, i32, i32
  }
}

</mosaic_0001>

<llo_original>
// kernel: tpu_custom_call.1
$region0: #{tpu_custom_call.1}
  #allocation0 [shape = 'u32[]', space=smem, size = 0x4, offset = 0x4, fixed_abs, tag = 'smem constant byte address 0x4 - core index']
  #allocation1 [shape = 'u32[144,128]{1,0:T(1,128)}', space=vmem, size = 0x12000, scoped, tag = 'internal scratch']
  %s0 = inlined_call_operand.hbm [shape: f32[8,16,20], index: 0, kind: input, shape index: {}]
  %s1 = inlined_call_operand.hbm [shape: f32[20,128], index: 1, kind: input, shape index: {}]
  %s2 = inlined_call_operand.hbm [shape: f32[16,128], index: 2, kind: input, shape index: {}]
  %s3 = inlined_call_operand.hbm [shape: f32[16,128], index: 3, kind: input, shape index: {}]
  %s4 = inlined_call_operand.hbm [shape: f32[8,16,128], index: 4, kind: output, shape index: {}]
  %s5 = sld [smem:[#allocation0]]
  $region65: #{tpu_custom_call.1} parent=0
    _
  %s7 = ssub.s32 1, %s5
  %s8 = scalar_select 0, %s7, %s5
  $region1: #{tpu_custom_call.1} parent=0
    #allocation2 [shape = 'u8[65536]{0}', space=vmem, size = 0x10000, scoped, tag = 'input window, operand 0']
    #allocation3 [shape = 's32[2]{0}', space=sflag, size = 0x8, scoped, tag = 'scoped memory for tpu_custom_call.1']
    #allocation4 [shape = 's32[2]{0}', space=sflag, size = 0x8, scoped, tag = 'scoped memory for tpu_custom_call.1']
    #allocation5 [shape = 'u8[12288]{0}', space=vmem, size = 0x3000, scoped, tag = 'input window, operand 1, single buffered']
    #allocation6 [shape = 's32[1]{0}', space=sflag, size = 0x4, scoped, tag = 'scoped memory for tpu_custom_call.1']
    #allocation7 [shape = 'u8[8192]{0}', space=vmem, size = 0x2000, scoped, tag = 'input window, operand 2, single buffered']
    #allocation8 [shape = 'u8[8192]{0}', space=vmem, size = 0x2000, scoped, tag = 'input window, operand 3, single buffered']
    #allocation9 [shape = 's32[1]{0}', space=sflag, size = 0x4, scoped, tag = 'scoped memory for tpu_custom_call.1']
    #allocation10 [shape = 'u8[65536]{0}', space=vmem, size = 0x10000, scoped, tag = 'output window, operand 0']
    %9 = vsyncpa [#allocation3], 0
    %s10 = scalar_lea.sflag [#allocation3], 1
    %11 = vsyncpa %s10, 0
    %12 = vsyncpa [#allocation6], 0
    %13 = vsyncpa [#allocation9], 0
    %14 = vsyncpa [#allocation4], 0
    %s15 = scalar_lea.sflag [#allocation4], 1
    %16 = vsyncpa %s15, 0
    loop: start=0, step=1, limit=4
    $region2: #{tpu_custom_call.1} parent=1 // loop_pre_header
      _
    $region3: #{tpu_custom_call.1} parent=1 // loop_header
      %s18 = sphi 0, %s22
      %p19 = scmp.ge.s32.totalorder %s18, 4
      %s28 = sphi 0, %s30
      %s31 = sphi 0, %s28
      %s32 = sphi 0, %s31
      %s48 = sphi 0, %s32
      %s52 = sphi 0, %s52
      %s54 = sphi 0, %s52
      %s55 = sphi 0, %s54
      %s69 = sphi 0, %s55
      %s73 = sphi 0, %s73
      %s75 = sphi 0, %s73
      %s76 = sphi 0, %s75
      %s90 = sphi 0, %s76
      %s94 = sphi 0, %s94
      %s96 = sphi 0, %s94
      %s97 = sphi 0, %s96
      %s111 = sphi 0, %s97
      %s117 = sphi 0, %s119
      %s120 = sphi 0, %s117
      %s121 = sphi 0, %s120
      %s137 = sphi 0, %s121
    $region4: #{tpu_custom_call.1} parent=1 // loop_header_branch
      %21 = sbr.rel (%p19) target = $region8
    $region5: #{tpu_custom_call.1} parent=1 // loop_body
      %s23 = ssub.s32 %s18, 1
      %s24 = ssub.s32 %s18, 2
      %s25 = sadd.s32 %s18, 1
      %s26 = ssub.s32 %s18, %s25
      %p27 = scmp.eq.s32.totalorder %s26, 0
      %s29 = sadd.s32 %s28, 1
      %s30 = scalar_select %p27, %s28, %s29
      %p33 = pneg %p27
      %p34 = scmp.eq.s32.totalorder %s18, 1
      %p35 = por %p33, %p34
      %p36 = scmp.ne.s32.totalorder %s28, %s31
      %p37 = scmp.eq.s32.totalorder %s18, 0
      %p38 = por %p36, %p37
      %p39 = scmp.ne.s32.totalorder %s28, %s31
      %p40 = scmp.eq.s32.totalorder %s23, 1
      %p41 = por %p39, %p40
      %p42 = scmp.ne.s32.totalorder %s31, %s32
      %p43 = scmp.eq.s32.totalorder %s23, 0
      %p44 = por %p42, %p43
      %p45 = scmp.ne.s32.totalorder %s31, %s32
      %p46 = scmp.eq.s32.totalorder %s24, 1
      %p47 = por %p45, %p46
      %p49 = scmp.ne.s32.totalorder %s32, %s48
      %p50 = scmp.eq.s32.totalorder %s24, 0
      %p51 = por %p49, %p50
      %s53 = sadd.s32 %s52, 1
      %p56 = scmp.eq.s32.totalorder %s18, 1
      %p57 = scmp.ne.s32.totalorder %s52, %s54
      %p58 = scmp.eq.s32.totalorder %s18, 0
      %p59 = por %p57, %p58
      %p60 = scmp.ne.s32.totalorder %s52, %s54
      %p61 = scmp.eq.s32.totalorder %s23, 1
      %p62 = por %p60, %p61
      %p63 = scmp.ne.s32.totalorder %s54, %s55
      %p64 = scmp.eq.s32.totalorder %s23, 0
      %p65 = por %p63, %p64
      %p66 = scmp.ne.s32.totalorder %s54, %s55
      %p67 = scmp.eq.s32.totalorder %s24, 1
      %p68 = por %p66, %p67
      %p70 = scmp.ne.s32.totalorder %s55, %s69
      %p71 = scmp.eq.s32.totalorder %s24, 0
      %p72 = por %p70, %p71
      %s74 = sadd.s32 %s73, 1
      %p77 = scmp.eq.s32.totalorder %s18, 1
      %p78 = scmp.ne.s32.totalorder %s73, %s75
      %p79 = scmp.eq.s32.totalorder %s18, 0
      %p80 = por %p78, %p79
      %p81 = scmp.ne.s32.totalorder %s73, %s75
      %p82 = scmp.eq.s32.totalorder %s23, 1
      %p83 = por %p81, %p82
      %p84 = scmp.ne.s32.totalorder %s75, %s76
      %p85 = scmp.eq.s32.totalorder %s23, 0
      %p86 = por %p84, %p85
      %p87 = scmp.ne.s32.totalorder %s75, %s76
      %p88 = scmp.eq.s32.totalorder %s24, 1
      %p89 = por %p87, %p88
      %p91 = scmp.ne.s32.totalorder %s76, %s90
      %p92 = scmp.eq.s32.totalorder %s24, 0
      %p93 = por %p91, %p92
      %s95 = sadd.s32 %s94, 1
      %p98 = scmp.eq.s32.totalorder %s18, 1
      %p99 = scmp.ne.s32.totalorder %s94, %s96
      %p100 = scmp.eq.s32.totalorder %s18, 0
      %p101 = por %p99, %p100
      %p102 = scmp.ne.s32.totalorder %s94, %s96
      %p103 = scmp.eq.s32.totalorder %s23, 1
      %p104 = por %p102, %p103
      %p105 = scmp.ne.s32.totalorder %s96, %s97
      %p106 = scmp.eq.s32.totalorder %s23, 0
      %p107 = por %p105, %p106
      %p108 = scmp.ne.s32.totalorder %s96, %s97
      %p109 = scmp.eq.s32.totalorder %s24, 1
      %p110 = por %p108, %p109
      %p112 = scmp.ne.s32.totalorder %s97, %s111
      %p113 = scmp.eq.s32.totalorder %s24, 0
      %p114 = por %p112, %p113
      %s115 = ssub.s32 %s18, %s25
      %p116 = scmp.eq.s32.totalorder %s115, 0
      %s118 = sadd.s32 %s117, 1
      %s119 = scalar_select %p116, %s117, %s118
      %p122 = pneg %p116
      %p123 = scmp.eq.s32.totalorder %s18, 1
      %p124 = por %p122, %p123
      %p125 = scmp.ne.s32.totalorder %s117, %s120
      %p126 = scmp.eq.s32.totalorder %s18, 0
      %p127 = por %p125, %p126
      %p128 = scmp.ne.s32.totalorder %s117, %s120
      %p129 = scmp.eq.s32.totalorder %s23, 1
      %p130 = por %p128, %p129
      %p131 = scmp.ne.s32.totalorder %s120, %s121
      %p132 = scmp.eq.s32.totalorder %s23, 0
      %p133 = por %p131, %p132
      %p134 = scmp.ne.s32.totalorder %s120, %s121
      %p135 = scmp.eq.s32.totalorder %s24, 1
      %p136 = por %p134, %p135
      %p138 = scmp.ne.s32.totalorder %s121, %s137
      %p139 = scmp.eq.s32.totalorder %s24, 0
      %p140 = por %p138, %p139
      %p141 = scmp.le.s32.totalorder 1, %s18
      %p142 = scmp.lt.s32.totalorder %s18, 3
      %p143 = pnand %p141, %p142
      %p144 = pneg %p143
      // Predicated region
      $region9: #{tpu_custom_call.1} parent=5 // pred_check
        _
      $region10: #{tpu_custom_call.1} parent=5 // pred_check_branch
        %146 = sbr.rel (%p143) target = $region12
      $region11: #{tpu_custom_call.1} parent=5 // pred_region
        %s147 = ssub.s32 %s18, 1
        // Predicated region
        $region13: #{tpu_custom_call.1} parent=11 // pred_check
          %p148 = pneg %p65
        $region14: #{tpu_custom_call.1} parent=11 // pred_check_branch
          %150 = sbr.rel (%p148) target = $region16
        $region15: #{tpu_custom_call.1} parent=11 // pred_region
          %s152 = ssub.s32 384, 384
          %153 = vsyncadd [#allocation6], %s152
          %s154 = sshll.u32 [#allocation5], 4
          %s155 = int_to_ptr.vmem [resolvable:$true] %s154
          %160 = dma.hbm_to_vmem [thread:$0]  %s1, 384, %s155, [#allocation6], 128, 128, 8
        $region16: #{tpu_custom_call.1} parent=11 // pred_fallthru
          _
        // Predicated region
        $region17: #{tpu_custom_call.1} parent=11 // pred_check
          %p161 = pneg %p86
        $region18: #{tpu_custom_call.1} parent=11 // pred_check_branch
          %163 = sbr.rel (%p161) target = $region20
        $region19: #{tpu_custom_call.1} parent=11 // pred_region
          %s165 = ssub.s32 256, 256
          %166 = vsyncadd [#allocation6], %s165
          %s167 = sshll.u32 [#allocation7], 4
          %s168 = int_to_ptr.vmem [resolvable:$true] %s167
          %173 = dma.hbm_to_vmem [thread:$0]  %s2, 256, %s168, [#allocation6], 128, 128, 8
        $region20: #{tpu_custom_call.1} parent=11 // pred_fallthru
          _
        // Predicated region
        $region21: #{tpu_custom_call.1} parent=11 // pred_check
          %p174 = pneg %p107
        $region22: #{tpu_custom_call.1} parent=11 // pred_check_branch
          %176 = sbr.rel (%p174) target = $region24
        $region23: #{tpu_custom_call.1} parent=11 // pred_region
          %s178 = ssub.s32 256, 256
          %179 = vsyncadd [#allocation9], %s178
          %s180 = sshll.u32 [#allocation8], 4
          %s181 = int_to_ptr.vmem [resolvable:$true] %s180
          %186 = dma.hbm_to_vmem [thread:$0]  %s3, 256, %s181, [#allocation9], 128, 128, 8
        $region24: #{tpu_custom_call.1} parent=11 // pred_fallthru
          _
      $region12: #{tpu_custom_call.1} parent=5 // pred_fallthru
        _
      %p187 = scmp.lt.s32.totalorder %s18, 2
      // Predicated region
      $region25: #{tpu_custom_call.1} parent=5 // pred_check
        %p188 = pneg %p187
      $region26: #{tpu_custom_call.1} parent=5 // pred_check_branch
        %190 = sbr.rel (%p188) target = $region28
      $region27: #{tpu_custom_call.1} parent=5 // pred_region
        // Predicated region
        $region29: #{tpu_custom_call.1} parent=27 // pred_check
          %p191 = pneg %p38
        $region30: #{tpu_custom_call.1} parent=27 // pred_check_branch
          %193 = sbr.rel (%p191) target = $region32
        $region31: #{tpu_custom_call.1} parent=27 // pred_region
          %s194 = sand.u32 %s28, 1
          %s195 = scalar_lea.sflag [#allocation3], %s194
          %s196 = sand.u32 %s28, 1
          %s197 = smul.addr %s196, 64
          %s198 = scalar_lea.vmem [#allocation2], %s197
          %s199 = smul.u32 4, %s18
          %s201 = ssub.s32 1024, 1024
          %202 = vsyncadd %s195, %s201
          %s203 = smul.addr %s199, 2
          %s204 = smul.addr %s203, 128
          %s205 = scalar_lea.hbm %s0, %s204
          %s206 = sshll.u32 %s198, 4
          %s207 = int_to_ptr.vmem [resolvable:$true] %s206
          %212 = dma.hbm_to_vmem [thread:$0]  %s205, 1024, %s207, %s195, 128, 128, 8
        $region32: #{tpu_custom_call.1} parent=27 // pred_fallthru
          _
      $region28: #{tpu_custom_call.1} parent=5 // pred_fallthru
        _
      %p213 = scmp.le.s32.totalorder 1, %s18
      %p214 = scmp.lt.s32.totalorder %s18, 3
      %p215 = pnand %p213, %p214
      %p216 = pneg %p215
      // Predicated region
      $region33: #{tpu_custom_call.1} parent=5 // pred_check
        _
      $region34: #{tpu_custom_call.1} parent=5 // pred_check_branch
        %218 = sbr.rel (%p215) target = $region36
      $region35: #{tpu_custom_call.1} parent=5 // pred_region
        %s219 = ssub.s32 %s18, 1
        %s220 = sand.u32 %s31, 1
        %s221 = scalar_lea.sflag [#allocation3], %s220
        %s222 = sand.u32 %s31, 1
        %s223 = smul.addr %s222, 64
        %s224 = scalar_lea.vmem [#allocation2], %s223
        // Predicated region
        $region37: #{tpu_custom_call.1} parent=35 // pred_check
          %p225 = pneg %p44
        $region38: #{tpu_custom_call.1} parent=35 // pred_check_branch
          %227 = sbr.rel (%p225) target = $region40
        $region39: #{tpu_custom_call.1} parent=35 // pred_region
          %228 = dma.done %s221, 1024
        $region40: #{tpu_custom_call.1} parent=35 // pred_fallthru
          _
        // Predicated region
        $region41: #{tpu_custom_call.1} parent=35 // pred_check
          %p229 = pneg %p65
        $region42: #{tpu_custom_call.1} parent=35 // pred_check_branch
          %231 = sbr.rel (%p229) target = $region44
        $region43: #{tpu_custom_call.1} parent=35 // pred_region
          %232 = dma.done [#allocation6], 384
        $region44: #{tpu_custom_call.1} parent=35 // pred_fallthru
          _
        // Predicated region
        $region45: #{tpu_custom_call.1} parent=35 // pred_check
          %p233 = pneg %p86
        $region46: #{tpu_custom_call.1} parent=35 // pred_check_branch
          %235 = sbr.rel (%p233) target = $region48
        $region47: #{tpu_custom_call.1} parent=35 // pred_region
          %236 = dma.done [#allocation6], 256
        $region48: #{tpu_custom_call.1} parent=35 // pred_fallthru
          _
        // Predicated region
        $region49: #{tpu_custom_call.1} parent=35 // pred_check
          %p237 = pneg %p107
        $region50: #{tpu_custom_call.1} parent=35 // pred_check_branch
          %239 = sbr.rel (%p237) target = $region52
        $region51: #{tpu_custom_call.1} parent=35 // pred_region
          %240 = dma.done [#allocation9], 256
        $region52: #{tpu_custom_call.1} parent=35 // pred_fallthru
          _
        %s241 = sand.u32 %s31, 1
        %s242 = scalar_lea.sflag [#allocation3], %s241
        %s243 = sand.u32 %s31, 1
        %s244 = smul.addr %s243, 64
        %s245 = scalar_lea.vmem [#allocation2], %s244
        %p246 = pneg %p44
        %p247 = pneg %p41
        %p248 = pneg %p65
        %p249 = pneg %p62
        %p250 = pneg %p86
        %p251 = pneg %p83
        %p252 = pneg %p107
        %p253 = pneg %p104
        %p254 = pneg %p133
        %p255 = pneg %p130
        %s256 = sand.u32 %s120, 1
        %s257 = scalar_lea.sflag [#allocation4], %s256
        %s258 = sand.u32 %s120, 1
        %s259 = smul.addr %s258, 64
        %s260 = scalar_lea.vmem [#allocation10], %s259
        %s261 = smul.u32 4, %s23
        %s262 = smul.u32 4, %s23
        %v263 = vld [vmem:[%s224] sm:$0xff]
        %v264 = vld [vmem:[%s224 + $0x8] sm:$0xff]
        %v265 = vld [vmem:[%s224 + $0x10] sm:$0xff]
        %v266 = vld [vmem:[%s224 + $0x18] sm:$0xff]
        %v267 = vld [vmem:[%s224 + $0x20] sm:$0xff]
        %v268 = vld [vmem:[%s224 + $0x28] sm:$0xff]
        %v269 = vld [vmem:[%s224 + $0x30] sm:$0xff]
        %v270 = vld [vmem:[%s224 + $0x38] sm:$0xff]
        %v271 = vld [vmem:[#allocation5] sm:$0xff]
        %v272 = vld [vmem:[#allocation5 + $0x8] sm:$0xff]
        %v273 = vld [vmem:[#allocation5 + $0x10] sm:$0xf]
        %vm274 = vcmask 162816
        %v276 = vsel %vm274, %v263, 0
        %v279 = vsel %vm274, %v264, 0
        %v282 = vsel %vm274, %v265, 0
        %v285 = vsel %vm274, %v266, 0
        %v288 = vsel %vm274, %v267, 0
        %v291 = vsel %vm274, %v268, 0
        %v294 = vsel %vm274, %v269, 0
        %v297 = vsel %vm274, %v270, 0
        %vm299 = vcmask 1043456
        %v301 = vsel %vm299, %v273, 0
        %303 = vmatprep.subr.mxu0 0.0
        %304 = vmatpush1.msra.mxu0 %v271
        %305 = vmatprep.subr.mxu0 0.0
        %306 = vmatpush1.msra.mxu0 %v272
        %307 = vmatprep.subr.mxu0 0.0
        %308 = vmatpush1.msra.mxu0 %v301
        %309 = vmatprep.subr.mxu0 0.0
        %310 = vmatpush1.msra.mxu0 0.0
        %311 = vmatprep.subr.mxu0 0.0
        %312 = vmatpush1.msra.mxu0 0.0
        %313 = vmatprep.subr.mxu0 0.0
        %314 = vmatpush1.msra.mxu0 0.0
        %315 = vmatprep.subr.mxu0 0.0
        %316 = vmatpush1.msra.mxu0 0.0
        %317 = vmatprep.subr.mxu0 0.0
        %318 = vmatpush1.msra.mxu0 0.0
        %319 = vmatprep.subr.mxu0 0.0
        %320 = vmatpush1.msra.mxu0 0.0
        %321 = vmatprep.subr.mxu0 0.0
        %322 = vmatpush1.msra.mxu0 0.0
        %323 = vmatprep.subr.mxu0 0.0
        %324 = vmatpush1.msra.mxu0 0.0
        %325 = vmatprep.subr.mxu0 0.0
        %326 = vmatpush1.msra.mxu0 0.0
        %327 = vmatprep.subr.mxu0 0.0
        %328 = vmatpush1.msra.mxu0 0.0
        %329 = vmatprep.subr.mxu0 0.0
        %330 = vmatpush1.msra.mxu0 0.0
        %331 = vmatprep.subr.mxu0 0.0
        %332 = vmatpush1.msra.mxu0 0.0
        %333 = vmatprep.subr.mxu0 0.0
        %334 = vmatpush1.msra.mxu0 0.0
        %335 = vmatprep.subr.mxu0 0.0
        %336 = vmatpush1.msra.mxu0 0.0
        %337 = vmatprep.subr.mxu0 0.0
        %338 = vmatpush1.msra.mxu0 0.0
        %339 = vmatprep.subr.mxu0 0.0
        %340 = vmatpush1.msra.mxu0 0.0
        %341 = vmatprep.subr.mxu0 0.0
        %342 = vmatpush1.msra.mxu0 0.0
        %343 = vmatprep.subr.mxu0 0.0
        %344 = vmatpush1.msra.mxu0 0.0
        %345 = vmatprep.subr.mxu0 0.0
        %346 = vmatpush1.msra.mxu0 0.0
        %347 = vmatprep.subr.mxu0 0.0
        %348 = vmatpush1.msra.mxu0 0.0
        %349 = vmatprep.subr.mxu0 0.0
        %350 = vmatpush1.msra.mxu0 0.0
        %351 = vmatprep.subr.mxu0 0.0
        %352 = vmatpush1.msra.mxu0 0.0
        %353 = vmatprep.subr.mxu0 0.0
        %354 = vmatpush1.msra.mxu0 0.0
        %355 = vmatprep.subr.mxu0 0.0
        %356 = vmatpush1.msra.mxu0 0.0
        %357 = vmatprep.subr.mxu0 0.0
        %358 = vmatpush1.msra.mxu0 0.0
        %359 = vmatprep.subr.mxu0 0.0
        %360 = vmatpush1.msra.mxu0 0.0
        %361 = vmatprep.subr.mxu0 0.0
        %362 = vmatpush1.msra.mxu0 0.0
        %363 = vmatprep.subr.mxu0 0.0
        %364 = vmatpush1.msra.mxu0 0.0
        %365 = vmatprep.subr.mxu0 0.0
        %366 = vmatpush1.msra.mxu0 0.0
        %367 = vmatprep.mubr.f32.mxu0 0.0
        %368 = vmatmul.mubr.f32.gmra.mrb[0].mxu0 %v276
        %v369 = vpop.f32.mrb[0].mxu0
        %v370 = vadd.f32 0.0, %v369
        %v371 = vpop.f32.mrb[0].mxu0
        %372 = vmatprep.mubr.f32.mxu0 0.0
        %373 = vmatmul.mubr.f32.gmra.mrb[0].mxu0 %v279
        %v374 = vpop.f32.mrb[0].mxu0
        %v375 = vadd.f32 0.0, %v374
        %v376 = vpop.f32.mrb[0].mxu0
        %377 = vmatprep.mubr.f32.mxu0 0.0
        %378 = vmatmul.mubr.f32.gmra.mrb[0].mxu0 %v282
        %v379 = vpop.f32.mrb[0].mxu0
        %v380 = vadd.f32 0.0, %v379
        %v381 = vpop.f32.mrb[0].mxu0
        %382 = vmatprep.mubr.f32.mxu0 0.0
        %383 = vmatmul.mubr.f32.gmra.mrb[0].mxu0 %v285
        %v384 = vpop.f32.mrb[0].mxu0
        %v385 = vadd.f32 0.0, %v384
        %v386 = vpop.f32.mrb[0].mxu0
        %387 = vmatprep.mubr.f32.mxu0 0.0
        %388 = vmatmul.mubr.f32.gmra.mrb[0].mxu0 %v288
        %v389 = vpop.f32.mrb[0].mxu0
        %v390 = vadd.f32 0.0, %v389
        %v391 = vpop.f32.mrb[0].mxu0
        %392 = vmatprep.mubr.f32.mxu0 0.0
        %393 = vmatmul.mubr.f32.gmra.mrb[0].mxu0 %v291
        %v394 = vpop.f32.mrb[0].mxu0
        %v395 = vadd.f32 0.0, %v394
        %v396 = vpop.f32.mrb[0].mxu0
        %397 = vmatprep.mubr.f32.mxu0 0.0
        %398 = vmatmul.mubr.f32.gmra.mrb[0].mxu0 %v294
        %v399 = vpop.f32.mrb[0].mxu0
        %v400 = vadd.f32 0.0, %v399
        %v401 = vpop.f32.mrb[0].mxu0
        %402 = vmatprep.mubr.f32.mxu0 0.0
        %403 = vmatmul.mubr.f32.gmra.mrb[0].mxu0 %v297
        %v404 = vpop.f32.mrb[0].mxu0
        %v405 = vadd.f32 0.0, %v404
        %v406 = vpop.f32.mrb[0].mxu0
        %407 = vdwg.mxu0
        %v408 = vld [vmem:[#allocation7] sm:$0xff]
        %v409 = vld [vmem:[#allocation7 + $0x8] sm:$0xff]
        %v410 = vmul.f32 %v370, %v408
        %v411 = vmul.f32 %v375, %v409
        %v412 = vmul.f32 %v380, %v408
        %v413 = vmul.f32 %v385, %v409
        %v414 = vmul.f32 %v390, %v408
        %v415 = vmul.f32 %v395, %v409
        %v416 = vmul.f32 %v400, %v408
        %v417 = vmul.f32 %v405, %v409
        %v418 = vld [vmem:[#allocation8] sm:$0xff]
        %v419 = vld [vmem:[#allocation8 + $0x8] sm:$0xff]
        %v420 = vadd.f32 %v410, %v418
        %v421 = vadd.f32 %v411, %v419
        %v422 = vadd.f32 %v412, %v418
        %v423 = vadd.f32 %v413, %v419
        %v424 = vadd.f32 %v414, %v418
        %v425 = vadd.f32 %v415, %v419
        %v426 = vadd.f32 %v416, %v418
        %v427 = vadd.f32 %v417, %v419
        %428 = vst [vmem:[%s260] sm:$0xff] %v420
        %429 = vst [vmem:[%s260 + $0x8] sm:$0xff] %v421
        %430 = vst [vmem:[%s260 + $0x10] sm:$0xff] %v422
        %431 = vst [vmem:[%s260 + $0x18] sm:$0xff] %v423
        %432 = vst [vmem:[%s260 + $0x20] sm:$0xff] %v424
        %433 = vst [vmem:[%s260 + $0x28] sm:$0xff] %v425
        %434 = vst [vmem:[%s260 + $0x30] sm:$0xff] %v426
        %435 = vst [vmem:[%s260 + $0x38] sm:$0xff] %v427
        %s436 = sand.u32 %s120, 1
        %s437 = scalar_lea.sflag [#allocation4], %s436
        %s438 = sand.u32 %s120, 1
        %s439 = smul.addr %s438, 64
        %s440 = scalar_lea.vmem [#allocation10], %s439
        // Predicated region
        $region53: #{tpu_custom_call.1} parent=35 // pred_check
          %p441 = pneg %p130
        $region54: #{tpu_custom_call.1} parent=35 // pred_check_branch
          %443 = sbr.rel (%p441) target = $region56
        $region55: #{tpu_custom_call.1} parent=35 // pred_region
          %s444 = smul.u32 4, %s23
          %s446 = ssub.s32 1024, 1024
          %447 = vsyncadd %s437, %s446
          %s448 = smul.addr %s444, 2
          %s449 = smul.addr %s448, 128
          %s450 = scalar_lea.hbm %s4, %s449
          %s451 = sshll.u32 %s440, 4
          %s452 = int_to_ptr.vmem [resolvable:$true] %s451
          %457 = dma.vmem_to_hbm [thread:$0]  %s452, 1024, %s450, %s437, 128, 128, 8
        $region56: #{tpu_custom_call.1} parent=35 // pred_fallthru
          _
      $region36: #{tpu_custom_call.1} parent=5 // pred_fallthru
        _
      %p458 = scmp.le.s32.totalorder 2, %s18
      // Predicated region
      $region57: #{tpu_custom_call.1} parent=5 // pred_check
        %p459 = pneg %p458
      $region58: #{tpu_custom_call.1} parent=5 // pred_check_branch
        %461 = sbr.rel (%p459) target = $region60
      $region59: #{tpu_custom_call.1} parent=5 // pred_region
        %s462 = ssub.s32 %s18, 2
        // Predicated region
        $region61: #{tpu_custom_call.1} parent=59 // pred_check
          %p463 = pneg %p136
        $region62: #{tpu_custom_call.1} parent=59 // pred_check_branch
          %465 = sbr.rel (%p463) target = $region64
        $region63: #{tpu_custom_call.1} parent=59 // pred_region
          %s466 = sand.u32 %s121, 1
          %s467 = scalar_lea.sflag [#allocation4], %s466
          %s468 = sand.u32 %s121, 1
          %s469 = smul.addr %s468, 64
          %s470 = scalar_lea.vmem [#allocation10], %s469
          %471 = dma.done %s467, 1024
        $region64: #{tpu_custom_call.1} parent=59 // pred_fallthru
          _
      $region60: #{tpu_custom_call.1} parent=5 // pred_fallthru
        _
    $region6: #{tpu_custom_call.1} parent=1 // loop_footer
      %s22 = sadd.s32 1, %s18
    $region7: #{tpu_custom_call.1} parent=1 // loop_footer_branch
      %17 = sbr.rel target = $region3
    $region8: #{tpu_custom_call.1} parent=1 // loop_exit
      _
    %472 = vsyncpa [#allocation3], 1
    %s473 = scalar_lea.sflag [#allocation3], 1
    %474 = vsyncpa %s473, 1
    %475 = vsyncpa [#allocation6], 1
    %476 = vsyncpa [#allocation9], 1
    %477 = vsyncpa [#allocation4], 1
    %s478 = scalar_lea.sflag [#allocation4], 1
    %479 = vsyncpa %s478, 1

</llo_original>
